<compile_context>
chip_gen: v5e
topology: v5e:2x2
jax: 0.10.0
libtpu: 0.0.40
codegen_flags: <defaults>
</compile_context>

<pallas_src>
import functools
import math

import jax
import jax.numpy as jnp
from jax.experimental import pallas as pl
from jax.experimental.pallas import tpu as pltpu


def attention_kernel(x_ref, w_ref, b_ref, out_ref, *, low_precision_mul):
    # x_ref : (TB, S, Fp)  w_ref : (1, 1, Fp)  b_ref : (1, S)  out_ref : (TB, Fp)
    w = w_ref[...]                                   # (1, 1, Fp) f32
    b = b_ref[...].astype(jnp.float32)               # (1, S)

    # --- attention logits: reduce over the feature (lane) axis -> (TB, S) ---
    # Per-expression upcast (no persistent full-tile f32 slab), f32 accumulate.
    if low_precision_mul:
        prod = (x_ref[...] * w.astype(x_ref.dtype)).astype(jnp.float32)
    else:
        prod = x_ref[...].astype(jnp.float32) * w
    eij = jnp.sum(prod, axis=-1)                      # (TB, S)

    # --- softmax(tanh(.)) over the step axis, lane-dense vregs for EUP ------
    a = jnp.exp(jnp.tanh(eij + b))                    # (TB, S)
    denom = jnp.sum(a, axis=-1, keepdims=True) + 1e-10
    a = a * pl.reciprocal(denom, approx=True)         # EUP vrcp (free slot)

    # --- weighted sum over the step axis -> (TB, Fp), lane-dense output -----
    a3 = a[:, :, None]                                 # (TB, S, 1)
    if low_precision_mul:
        wsum = jnp.sum((x_ref[...] * a3.astype(x_ref.dtype)).astype(jnp.float32),
                       axis=1)
    else:
        wsum = jnp.sum(x_ref[...].astype(jnp.float32) * a3, axis=1)
    out_ref[...] = wsum.astype(out_ref.dtype)


def _round_up(n, m):
    return ((n + m - 1) // m) * m


def _device_kind():
    try:
        return jax.devices()[0].device_kind.lower()
    except Exception:
        return ""


def _vmem_capacity_bytes(kind):
    try:
        cap = getattr(pltpu.get_tpu_info(), "vmem_capacity_bytes", None)
        if cap:
            return int(cap)
    except Exception:
        pass
    # Generation-aware fallback: v5e/v6e have 128 MiB VMEM, v7x has 64 MiB/TC.
    if ("v5" in kind) or ("v6" in kind):
        return 128 << 20
    return 64 << 20


def attention_forward(x, weight, bias):
    """x: (B, S, F), weight: (F, 1), bias: (S,) -> (B, F)."""
    B, S, F = x.shape
    kind = _device_kind()
    itemsize = jnp.dtype(x.dtype).itemsize

    # --- lane-dense feature padding (exact; no-op when F % 128 == 0) --------
    Fp = _round_up(F, 128)
    w_flat = weight.reshape(F)
    if Fp != F:
        x_p = jnp.pad(x, ((0, 0), (0, 0), (0, Fp - F)))
        w_flat = jnp.pad(w_flat, (0, Fp - F))
    else:
        x_p = x
    w3 = w_flat.reshape(1, 1, Fp).astype(jnp.float32)
    b2 = bias.reshape(1, S).astype(jnp.float32)

    # --- VMEM-aware batch-tile sizing ----------------------------------------
    vmem_cap = _vmem_capacity_bytes(kind)
    headroom = (16 << 20) if vmem_cap <= (64 << 20) else (12 << 20)
    budget = max(vmem_cap - headroom, 16 << 20)

    # Per batch-row VMEM cost: double-buffered x tile + double-buffered out tile
    # + conservative allowance for in-kernel f32 temporaries (logit / weighted
    # products; pipelined per-vreg but budgeted as full passes).
    per_row = (2 * S * Fp * itemsize          # x (double buffered)
               + 2 * Fp * itemsize            # out (double buffered)
               + 2 * S * Fp * 4)              # f32 temporaries (conservative)
    tb_fit = max(8, (budget // per_row) // 8 * 8)

    if B <= 8:
        tb = B                 # tiny problem: one step, full-extent batch block
    else:
        # Aim for ~8 grid steps (pipelining + v7x megacore sharding); tb is a
        # multiple of 8 (output block sublane rule) and never exceeds VMEM fit.
        tb = min(tb_fit, max(8, _round_up(pl.cdiv(B, 8), 8)))

    grid = (pl.cdiv(B, tb),)

    resident = 2 * (Fp + S) * 4                         # weight + bias buffers
    needed = tb * per_row + resident
    vmem_limit = int(min(max(needed + (4 << 20), 32 << 20), budget))

    # bf16 elementwise multiplies only on chips with a bf16 VPU (v6e/v7x).
    low_precision_mul = (x.dtype == jnp.bfloat16) and not any(
        v in kind for v in ("v2", "v3", "v4", "v5"))

    cost = pl.CostEstimate(
        flops=4 * B * S * F,
        transcendentals=2 * B * S,
        bytes_accessed=itemsize * (B * S * Fp + B * Fp) + 4 * (Fp + S),
    )

    out_p = pl.pallas_call(
        functools.partial(attention_kernel, low_precision_mul=low_precision_mul),
        out_shape=jax.ShapeDtypeStruct((B, Fp), x.dtype),
        grid=grid,
        in_specs=[
            pl.BlockSpec((tb, S, Fp), lambda i: (i, 0, 0)),   # batch-tiled x
            pl.BlockSpec((1, 1, Fp), lambda i: (0, 0, 0)),    # resident weight
            pl.BlockSpec((1, S), lambda i: (0, 0)),           # resident bias
        ],
        out_specs=pl.BlockSpec((tb, Fp), lambda i: (i, 0)),
        compiler_params=pltpu.CompilerParams(
            dimension_semantics=("parallel",),
            vmem_limit_bytes=vmem_limit,
        ),
        cost_estimate=cost,
    )(x_p, w3, b2)

    return out_p[:, :F] if Fp != F else out_p


def attention_reference(x, weight, bias):
    B, S, F = x.shape
    eij = (x.reshape(-1, F) @ weight).reshape(-1, S)
    eij = eij + bias
    eij = jnp.tanh(eij)
    a = jnp.exp(eij)
    a = a / (jnp.sum(a, axis=1, keepdims=True) + 1e-10)
    return jnp.sum(x * a[:, :, None], axis=1)


# TODO(synk): the optional `mask` argument of Attention.forward is not
# implemented; this kernel covers the default mask=None path.

if __name__ == "__main__":
    batch, step_dim, feature_dim = 2, 8, 32

    key = jax.random.PRNGKey(0)
    kx, kw = jax.random.split(key)

    # Deterministic init matching nn.init.kaiming_uniform_ on a (F, 1) tensor:
    # fan_in = 1, gain = sqrt(2) -> bound = sqrt(6).
    bound = math.sqrt(2.0) * math.sqrt(3.0 / 1.0)
    weight = jax.random.uniform(
        kw, (feature_dim, 1), dtype=jnp.float32, minval=-bound, maxval=bound)
    bias = jnp.zeros((step_dim,), dtype=jnp.float32)

    x = jax.random.normal(kx, (batch, step_dim, feature_dim), dtype=jnp.float32)

    out = attention_forward(x, weight, bias)
    out = jax.block_until_ready(out)

    ref = attention_reference(x, weight, bias)
    assert out.shape == (batch, feature_dim)
    # Tolerance loosened slightly for pl.reciprocal(approx=True) (~2^-12 rel).
    assert jnp.allclose(out, ref, atol=2e-3, rtol=2e-3), "mismatch vs reference"

    print("KERNEL_OK")
</pallas_src>

<mosaic_0001>
module attributes {stable_mosaic.version = 11 : i64} {
  func.func @attention_kernel(%arg0: i32, %arg1: memref<2x8x128xf32, #tpu.memory_space<vmem>>, %arg2: memref<1x1x128xf32, #tpu.memory_space<vmem>>, %arg3: memref<1x8xf32, #tpu.memory_space<vmem>>, %arg4: memref<2x128xf32, #tpu.memory_space<vmem>>) attributes {dimension_semantics = [#tpu.dimension_semantics<parallel>], iteration_bounds = array<i64: 1>, scalar_prefetch = 0 : i64, scratch_operands = 0 : i64, tpu.core_type = #tpu.core_type<tc>, window_params = [{transform_indices = @transform_0, window_bounds = array<i64: 2, 8, 128>}, {pipeline_mode = #tpu.pipeline_mode<synchronous>, transform_indices = @transform_1, window_bounds = array<i64: 1, 1, 128>}, {pipeline_mode = #tpu.pipeline_mode<synchronous>, transform_indices = @transform_2, window_bounds = array<i64: 1, 8>}, {transform_indices = @transform_3, window_bounds = array<i64: 2, 128>}]} {
    %c0 = arith.constant 0 : index
    %c0_0 = arith.constant 0 : index
    %c0_1 = arith.constant 0 : index
    %0 = vector.load %arg2[%c0, %c0_0, %c0_1] : memref<1x1x128xf32, #tpu.memory_space<vmem>>, vector<1x1x128xf32>
    %c0_2 = arith.constant 0 : index
    %c0_3 = arith.constant 0 : index
    %1 = vector.load %arg3[%c0_2, %c0_3] : memref<1x8xf32, #tpu.memory_space<vmem>>, vector<1x8xf32>
    %c0_4 = arith.constant 0 : index
    %c0_5 = arith.constant 0 : index
    %c0_6 = arith.constant 0 : index
    %2 = vector.load %arg1[%c0_4, %c0_5, %c0_6] : memref<2x8x128xf32, #tpu.memory_space<vmem>>, vector<2x8x128xf32>
    %3 = vector.broadcast %0 : vector<1x1x128xf32> to vector<2x8x128xf32>
    %4 = arith.mulf %2, %3 : vector<2x8x128xf32>
    %cst = arith.constant dense<0.000000e+00> : vector<2x8xf32>
    %5 = vector.multi_reduction <add>, %4, %cst [2] : vector<2x8x128xf32> to vector<2x8xf32>
    %6 = vector.broadcast %1 : vector<1x8xf32> to vector<2x8xf32>
    %7 = arith.addf %5, %6 : vector<2x8xf32>
    %8 = math.tanh %7 : vector<2x8xf32>
    %9 = math.exp %8 : vector<2x8xf32>
    %cst_7 = arith.constant dense<0.000000e+00> : vector<2xf32>
    %10 = vector.multi_reduction <add>, %9, %cst_7 [1] : vector<2x8xf32> to vector<2xf32>
    %11 = vector.shape_cast %10 : vector<2xf32> to vector<2x1xf32>
    %cst_8 = arith.constant 1.000000e-10 : f32
    %12 = vector.broadcast %cst_8 : f32 to vector<2x1xf32>
    %13 = arith.addf %11, %12 : vector<2x1xf32>
    %14 = tpu.reciprocal %13 {approx = true} : vector<2x1xf32> -> vector<2x1xf32>
    %15 = vector.broadcast %14 : vector<2x1xf32> to vector<2x8xf32>
    %16 = arith.mulf %9, %15 : vector<2x8xf32>
    %17 = vector.shape_cast %16 : vector<2x8xf32> to vector<2x8x1xf32>
    %c0_9 = arith.constant 0 : index
    %c0_10 = arith.constant 0 : index
    %c0_11 = arith.constant 0 : index
    %18 = vector.load %arg1[%c0_9, %c0_10, %c0_11] : memref<2x8x128xf32, #tpu.memory_space<vmem>>, vector<2x8x128xf32>
    %19 = vector.broadcast %17 : vector<2x8x1xf32> to vector<2x8x128xf32>
    %20 = arith.mulf %18, %19 : vector<2x8x128xf32>
    %cst_12 = arith.constant dense<0.000000e+00> : vector<2x128xf32>
    %21 = vector.multi_reduction <add>, %20, %cst_12 [1] : vector<2x8x128xf32> to vector<2x128xf32>
    %c0_13 = arith.constant 0 : index
    %c0_14 = arith.constant 0 : index
    %22 = vector.load %arg4[%c0_13, %c0_14] : memref<2x128xf32, #tpu.memory_space<vmem>>, vector<2x128xf32>
    tpu.vector_store %arg4[%c0_13, %c0_14], %21 {strides = array<i32>} : memref<2x128xf32, #tpu.memory_space<vmem>>, vector<2x128xf32>,
    return
  }
  func.func @transform_0(%arg0: i32) -> (i32, i32, i32) {
    %c0_i32 = arith.constant 0 : i32
    %c0_i32_0 = arith.constant 0 : i32
    %c0_i32_1 = arith.constant 0 : i32
    return %arg0, %c0_i32, %c0_i32_0 : i32, i32, i32
  }
  func.func @transform_1(%arg0: i32) -> (i32, i32, i32) {
    %c0_i32 = arith.constant 0 : i32
    %c0_i32_0 = arith.constant 0 : i32
    %c0_i32_1 = arith.constant 0 : i32
    %c0_i32_2 = arith.constant 0 : i32
    return %c0_i32, %c0_i32_0, %c0_i32_1 : i32, i32, i32
  }
  func.func @transform_2(%arg0: i32) -> (i32, i32) {
    %c0_i32 = arith.constant 0 : i32
    %c0_i32_0 = arith.constant 0 : i32
    %c0_i32_1 = arith.constant 0 : i32
    return %c0_i32, %c0_i32_0 : i32, i32
  }
  func.func @transform_3(%arg0: i32) -> (i32, i32) {
    %c0_i32 = arith.constant 0 : i32
    %c0_i32_0 = arith.constant 0 : i32
    return %arg0, %c0_i32 : i32, i32
  }
}

</mosaic_0001>

<llo_original>
// kernel: tpu_custom_call.1
$region0: #{tpu_custom_call.1}
  #allocation0 [shape = 'u32[]', space=smem, size = 0x4, offset = 0x4, fixed_abs, tag = 'smem constant byte address 0x4 - core index']
  #allocation1 [shape = 'u32[72,128]{1,0:T(1,128)}', space=vmem, size = 0x9000, scoped, tag = 'internal scratch']
  %s0 = inlined_call_operand.hbm [shape: f32[2,8,128], index: 0, kind: input, shape index: {}]
  %s1 = inlined_call_operand.hbm [shape: f32[1,1,128], index: 1, kind: input, shape index: {}]
  %s2 = inlined_call_operand.vmem [shape: f32[1,8], index: 2, kind: input, shape index: {}]
  %s3 = inlined_call_operand.hbm [shape: f32[2,128], index: 3, kind: output, shape index: {}]
  %s4 = sld [smem:[#allocation0]]
  $region30: #{tpu_custom_call.1} parent=0
    _
  %s6 = ssub.s32 1, %s4
  %s7 = scalar_select 0, %s6, %s4
  $region1: #{tpu_custom_call.1} parent=0
    #allocation2 [shape = 'u8[8192]{0}', space=vmem, size = 0x2000, scoped, tag = 'input window, operand 0, single buffered']
    #allocation3 [shape = 's32[1]{0}', space=sflag, size = 0x4, scoped, tag = 'scoped memory for tpu_custom_call.1']
    #allocation4 [shape = 's32[1]{0}', space=sflag, size = 0x4, scoped, tag = 'scoped memory for tpu_custom_call.1']
    #allocation5 [shape = 'u8[512]{0}', space=vmem, size = 0x400, scoped, tag = 'input window, operand 1, single buffered']
    #allocation6 [shape = 's32[1]{0}', space=sflag, size = 0x4, scoped, tag = 'scoped memory for tpu_custom_call.1']
    #allocation7 [shape = 'u8[1024]{0}', space=vmem, size = 0x400, scoped, tag = 'output window, operand 0, single buffered']
    %8 = vsyncpa [#allocation3], 0
    %9 = vsyncpa [#allocation6], 0
    %10 = vsyncpa [#allocation4], 0
    // Predicated region
    $region2: #{tpu_custom_call.1} parent=1 // pred_check
      _
    $region3: #{tpu_custom_call.1} parent=1 // pred_check_branch
      %12 = sbr.rel (0) target = $region5
    $region4: #{tpu_custom_call.1} parent=1 // pred_region
      %14 = vsyncadd [#allocation3], 0
      %s15 = sshll.u32 %s0, 4
      %s16 = int_to_ptr.hbm [resolvable:$true] %s15
      %s17 = sshll.u32 [#allocation2], 4
      %s18 = int_to_ptr.vmem [resolvable:$true] %s17
      %23 = dma.hbm_to_vmem [thread:$0]  %s16, 256, %s18, [#allocation3], 128, 128, 8
    $region5: #{tpu_custom_call.1} parent=1 // pred_fallthru
      _
    // Predicated region
    $region6: #{tpu_custom_call.1} parent=1 // pred_check
      _
    $region7: #{tpu_custom_call.1} parent=1 // pred_check_branch
      %25 = sbr.rel (0) target = $region9
    $region8: #{tpu_custom_call.1} parent=1 // pred_region
      %27 = vsyncadd [#allocation6], 0
      %s29 = sshll.u32 %s1, 4
      %s30 = int_to_ptr.hbm [resolvable:$true] %s29
      %s31 = sshll.u32 [#allocation5], 4
      %s32 = int_to_ptr.vmem [resolvable:$true] %s31
      %34 = dma.hbm_to_vmem [thread:$0]  %s30, 16, %s32, [#allocation6]
    $region9: #{tpu_custom_call.1} parent=1 // pred_fallthru
      _
    // Predicated region
    $region10: #{tpu_custom_call.1} parent=1 // pred_check
      _
    $region11: #{tpu_custom_call.1} parent=1 // pred_check_branch
      %36 = sbr.rel (0) target = $region13
    $region12: #{tpu_custom_call.1} parent=1 // pred_region
      _
    $region13: #{tpu_custom_call.1} parent=1 // pred_fallthru
      _
    // Predicated region
    $region14: #{tpu_custom_call.1} parent=1 // pred_check
      _
    $region15: #{tpu_custom_call.1} parent=1 // pred_check_branch
      %38 = sbr.rel (0) target = $region17
    $region16: #{tpu_custom_call.1} parent=1 // pred_region
      %40 = dma.done [#allocation3], 256
    $region17: #{tpu_custom_call.1} parent=1 // pred_fallthru
      _
    // Predicated region
    $region18: #{tpu_custom_call.1} parent=1 // pred_check
      _
    $region19: #{tpu_custom_call.1} parent=1 // pred_check_branch
      %42 = sbr.rel (0) target = $region21
    $region20: #{tpu_custom_call.1} parent=1 // pred_region
      %44 = dma.done [#allocation6], 16
    $region21: #{tpu_custom_call.1} parent=1 // pred_fallthru
      _
    %v45 = vld [vmem:[#allocation5] sm:$0x1]
    %v46 = vld [vmem:[%s2] sm:$0x1]
    %v47 = vld [vmem:[#allocation2] sm:$0xff]
    %v48 = vld [vmem:[#allocation2 + $0x8] sm:$0xff]
    %v50 = vperm.slane %v45, 0
    %v52 = vmul.f32 %v47, %v50
    %v53 = vmul.f32 %v48, %v50
    %54 = vadd.xlane.f32.xlu0 %v52
    %v55 = vpop.xlane.xlu0 %54
    %56 = vadd.xlane.f32.xlu0 %v53
    %v57 = vpop.xlane.xlu0 %56
    %v59 = vperm.slane %v46, 0
    %v60 = vlaneseq
    %v61 = vshrl.u32 %v60, 7
    %63 = vset.pattern.permute.xlu0 %v61
    %64 = vperm.xlu0 %63, %v59
    %v65 = vpop.permute.xlu0 %64
    %v67 = vadd.f32 %v55, %v65
    %v68 = vadd.f32 %v57, %v65
    %v69 = vtanh.pop %v67
    %v70 = vtanh.pop %v68
    %v71 = vmul.f32 %v69, 1.442695
    %v72 = vpow.pop %v71
    %v73 = vmul.f32 %v70, 1.442695
    %v74 = vpow.pop %v73
    %77 = vset.pattern.permute.xlu0 0
    %78 = vperm.xlu0 %77, %v72
    %v79 = vpop.permute.xlu0 %78
    %80 = vset.pattern.permute.xlu0 0
    %81 = vperm.xlu0 %80, %v74
    %v82 = vpop.permute.xlu0 %81
    %v83 = vlaneseq
    %v84 = vand.u32 %v83, 127
    %v85 = vperm.slane %v79, %v84
    %v86 = vperm.slane %v82, %v84
    %vm87 = vcmask 1041409
    %v88 = vsel %vm87, %v86, %v85
    %vm90 = vcmask 58368
    %v91 = vsel %vm90, %v88, 0.0
    %92 = vadd.xlane.f32.xlu0 %v91
    %v93 = vpop.xlane.xlu0 %92
    %v94 = vadd.f32 %v93, 1e-10
    %v95 = vrcp.pop %v94
    %v97 = vperm.slane %v95, 0
    %v98 = vperm.slane %v95, 1
    %v101 = vmul.f32 %v72, %v97
    %v102 = vmul.f32 %v74, %v98
    %104 = vset.pattern.permute.xlu0 0
    %105 = vperm.xlu0 %104, %v101
    %v106 = vpop.permute.xlu0 %105
    %109 = vset.pattern.permute.xlu0 0
    %110 = vperm.xlu0 %109, %v102
    %v111 = vpop.permute.xlu0 %110
    %v113 = vmul.f32 %v47, %v106
    %v114 = vmul.f32 %v48, %v111
    %v115 = vrot.slane %v113, 4
    %v116 = vadd.f32 %v113, %v115
    %v117 = vrot.slane %v116, 2
    %v118 = vadd.f32 %v116, %v117
    %v119 = vrot.slane %v118, 1
    %v120 = vadd.f32 %v118, %v119
    %v121 = vrot.slane %v114, 4
    %v122 = vadd.f32 %v114, %v121
    %v123 = vrot.slane %v122, 2
    %v124 = vadd.f32 %v122, %v123
    %v125 = vrot.slane %v124, 1
    %v126 = vadd.f32 %v124, %v125
    %v129 = vsel %vm87, %v126, %v120
    %131 = vst [vmem:[#allocation7] sm:$0x3] %v129
    // Predicated region
    $region22: #{tpu_custom_call.1} parent=1 // pred_check
      _
    $region23: #{tpu_custom_call.1} parent=1 // pred_check_branch
      %133 = sbr.rel (0) target = $region25
    $region24: #{tpu_custom_call.1} parent=1 // pred_region
      %135 = vsyncadd [#allocation4], 0
      %s137 = sshll.u32 [#allocation7], 4
      %s138 = int_to_ptr.vmem [resolvable:$true] %s137
      %s139 = sshll.u32 %s3, 4
      %s140 = int_to_ptr.hbm [resolvable:$true] %s139
      %142 = dma.vmem_to_hbm [thread:$0]  %s138, 32, %s140, [#allocation4]
    $region25: #{tpu_custom_call.1} parent=1 // pred_fallthru
      _
    // Predicated region
    $region26: #{tpu_custom_call.1} parent=1 // pred_check
      _
    $region27: #{tpu_custom_call.1} parent=1 // pred_check_branch
      %144 = sbr.rel (0) target = $region29
    $region28: #{tpu_custom_call.1} parent=1 // pred_region
      %146 = dma.done [#allocation4], 32
    $region29: #{tpu_custom_call.1} parent=1 // pred_fallthru
      _
    %147 = vsyncpa [#allocation3], 1
    %148 = vsyncpa [#allocation6], 1
    %149 = vsyncpa [#allocation4], 1

</llo_original>
